<compile_context>
chip_gen: v7x
topology: tpu7x:2x2x1
jax: 0.10.0
libtpu: 0.0.40
codegen_flags: <defaults>
</compile_context>

<pallas_src>
import functools

import jax
import jax.numpy as jnp
from jax.experimental import pallas as pl
from jax.experimental.pallas import tpu as pltpu


# ---------------------------------------------------------------------------
# Plain-JAX glue: farthest point sampling, ball query, gathers
# ---------------------------------------------------------------------------
def square_distance(src, dst):
    # src: [B, N, C], dst: [B, M, C] -> [B, N, M]
    dist = -2.0 * jnp.einsum("bnc,bmc->bnm", src, dst)
    dist = dist + jnp.sum(src**2, -1)[:, :, None]
    dist = dist + jnp.sum(dst**2, -1)[:, None, :]
    return dist


def index_points(points, idx):
    # points: [B, N, C], idx: [B, ...] -> [B, ..., C]
    B = points.shape[0]
    idx_flat = idx.reshape(B, -1)
    out = jnp.take_along_axis(points, idx_flat[..., None], axis=1)
    return out.reshape(*idx.shape, points.shape[-1])


def farthest_point_sample(xyz, npoint):
    # xyz: [B, N, 3] -> [B, npoint] int32
    B, N, _ = xyz.shape

    def body(i, carry):
        centroids, distance, farthest = carry
        centroids = centroids.at[:, i].set(farthest)
        centroid = jnp.take_along_axis(xyz, farthest[:, None, None], axis=1)  # [B,1,3]
        dist = jnp.sum((xyz - centroid) ** 2, -1)
        distance = jnp.minimum(distance, dist)
        farthest = jnp.argmax(distance, -1).astype(jnp.int32)
        return centroids, distance, farthest

    centroids = jnp.zeros((B, npoint), jnp.int32)
    distance = jnp.full((B, N), 1e10, jnp.float32)
    farthest = jnp.zeros((B,), jnp.int32)  # deterministic start (see TODO above)
    centroids, _, _ = jax.lax.fori_loop(0, npoint, body, (centroids, distance, farthest))
    return centroids


def query_ball_point(radius, nsample, xyz, new_xyz):
    # xyz: [B, N, 3], new_xyz: [B, S, 3] -> [B, S, nsample] int32
    B, N, _ = xyz.shape
    S = new_xyz.shape[1]
    sqrdists = square_distance(new_xyz, xyz)  # [B, S, N]
    idx = jnp.broadcast_to(jnp.arange(N, dtype=jnp.int32), (B, S, N))
    idx = jnp.where(sqrdists > radius**2, jnp.int32(N), idx)
    # nsample smallest indices (== torch sort()[:, :, :nsample]) via top_k of the negation;
    # avoids the O(N log N) full sort over the point axis.
    neg_topk, _ = jax.lax.top_k(-idx, nsample)
    group_idx = -neg_topk  # ascending, padded with N where fewer than nsample are in-ball
    group_first = jnp.broadcast_to(group_idx[:, :, :1], group_idx.shape)
    group_idx = jnp.where(group_idx == N, group_first, group_idx)
    return group_idx


def sample_and_group(npoint, radius, nsample, xyz, points):
    # xyz: [B, N, 3], points: [B, N, D] or None
    B, N, C = xyz.shape
    S = npoint
    fps_idx = farthest_point_sample(xyz, npoint)             # [B, S]
    new_xyz = index_points(xyz, fps_idx)                     # [B, S, 3]
    idx = query_ball_point(radius, nsample, xyz, new_xyz)    # [B, S, K]
    grouped_xyz = index_points(xyz, idx)                     # [B, S, K, 3]
    grouped_xyz_norm = grouped_xyz - new_xyz[:, :, None, :]  # [B, S, K, 3]
    if points is not None:
        grouped_points = index_points(points, idx)           # [B, S, K, D]
        new_points = jnp.concatenate([grouped_xyz_norm, grouped_points], axis=-1)
    else:
        new_points = grouped_xyz_norm
    return new_xyz, new_points


def sample_and_group_all(xyz, points):
    B, N, C = xyz.shape
    new_xyz = jnp.zeros((B, 1, C), xyz.dtype)
    grouped_xyz = xyz.reshape(B, 1, N, C)
    if points is not None:
        new_points = jnp.concatenate([grouped_xyz, points.reshape(B, 1, N, -1)], axis=-1)
    else:
        new_points = grouped_xyz
    return new_xyz, new_points


# ---------------------------------------------------------------------------
# Pallas kernel: per-point MLP (1x1 conv, folded BN, ReLU) + max over nsample
# ---------------------------------------------------------------------------
def _make_mlp_max_kernel(s_tile, K, nlayers):
    def kernel(*refs):
        x_ref = refs[0]
        o_ref = refs[-1]
        h = x_ref[0]                                 # (s_tile*K, Cin), bf16
        for i in range(nlayers):
            w = refs[1 + 2 * i][...]                 # (Cprev, Cnext), bf16 (BN scale folded)
            b = refs[2 + 2 * i][...]                 # (1, Cnext), f32 folded bias/BN shift
            acc = jnp.dot(h, w, preferred_element_type=jnp.float32)
            acc = jnp.maximum(acc + b, 0.0)          # f32 epilogue (no bf16 VPU on v5e)
            h = acc if i == nlayers - 1 else acc.astype(jnp.bfloat16)
        cout = h.shape[-1]
        pooled = jnp.max(h.reshape(s_tile, K, cout), axis=1)          # (s_tile, Cout) f32
        # Emit [Cout, S_tile] so the output lane dim is S_tile (lane-dense stores) and the
        # wrapper-level XLA transpose to [B, Cout, S] disappears.
        o_ref[0] = jnp.transpose(pooled, (1, 0)).astype(o_ref.dtype)  # (Cout, s_tile)
    return kernel


def _vmem_capacity_bytes():
    try:
        info = pltpu.get_tpu_info()
        cap = getattr(info, "vmem_capacity_bytes", None)
        if cap:
            return int(cap)
    except Exception:
        pass
    return 64 * 1024 * 1024  # conservative fallback: v7x per-TensorCore VMEM


def _choose_s_tile(S, K, Cin, c_max, c_out, budget_bytes):
    """Largest S-tile whose pipelined working set fits the budget (>=128 for MXU fill)."""
    def working_set(st):
        x_tile = st * K * Cin * 2        # bf16 input tile
        out_tile = st * c_out * 4        # f32 output tile
        act = st * K * c_max * 4         # largest f32 activation
        return 2 * (x_tile + out_tile) + 2 * act   # double-buffered I/O + ~2 live activations

    if S <= 128 or working_set(S) <= budget_bytes:
        return S
    s_tile = 128
    while s_tile * 2 <= S and working_set(s_tile * 2) <= budget_bytes:
        s_tile *= 2
    return s_tile


def mlp_max_pallas(x_grouped, weights, shifts):
    """x_grouped: [B, S, K, Cin] -> [B, Cout, S] (channel MLP + ReLU, max over K)."""
    B, S, K, Cin = x_grouped.shape
    nlayers = len(weights)
    Cout = int(weights[-1].shape[1])
    c_max = max([Cin] + [int(w.shape[1]) for w in weights])

    vmem_cap = _vmem_capacity_bytes()
    vmem_limit = min(int(vmem_cap * 0.75), 100 * 1024 * 1024)
    s_tile = _choose_s_tile(S, K, Cin, c_max, Cout, int(vmem_limit * 0.6))
    S_pad = pl.cdiv(S, s_tile) * s_tile
    if S_pad != S:
        x_grouped = jnp.pad(x_grouped, ((0, 0), (0, S_pad - S), (0, 0), (0, 0)))

    # K stays contiguous inside each S-tile so the in-kernel reshape(s_tile, K, C) is local.
    x_flat = x_grouped.reshape(B, S_pad * K, Cin).astype(jnp.bfloat16)

    in_specs = [pl.BlockSpec((1, s_tile * K, Cin), lambda b, s: (b, s, 0))]
    args = [x_flat]
    for w, sh in zip(weights, shifts):
        in_specs.append(pl.BlockSpec(w.shape, lambda b, s: (0, 0)))
        in_specs.append(pl.BlockSpec(sh.shape, lambda b, s: (0, 0)))
        args.extend([w, sh])

    flops = 2 * B * S_pad * K * sum(int(w.shape[0]) * int(w.shape[1]) for w in weights)
    bytes_accessed = (x_flat.size * 2
                      + sum(int(w.size) * 2 for w in weights)
                      + sum(int(sh.size) * 4 for sh in shifts)
                      + B * Cout * S_pad * 4)

    out = pl.pallas_call(
        _make_mlp_max_kernel(s_tile, K, nlayers),
        out_shape=jax.ShapeDtypeStruct((B, Cout, S_pad), jnp.float32),
        grid_spec=pl.GridSpec(
            grid=(B, S_pad // s_tile),
            in_specs=in_specs,
            out_specs=pl.BlockSpec((1, Cout, s_tile), lambda b, s: (b, 0, s)),
        ),
        compiler_params=pltpu.CompilerParams(
            dimension_semantics=("parallel", "parallel"),
            vmem_limit_bytes=int(vmem_limit),
        ),
        cost_estimate=pl.CostEstimate(
            flops=int(flops), transcendentals=0, bytes_accessed=int(bytes_accessed)),
    )(*args)

    return out[:, :, :S] if S_pad != S else out


# ---------------------------------------------------------------------------
# Module: parameter init + forward
# ---------------------------------------------------------------------------
def init_params(key, in_channel, mlp):
    """Deterministic synthetic parameters: conv (Cin,Cout) weight + bias, BN params/stats."""
    params = []
    last = in_channel
    for i, out_ch in enumerate(mlp):
        kw, kb, kg, kbt = jax.random.split(jax.random.fold_in(key, i), 4)
        w = jax.random.normal(kw, (last, out_ch), jnp.float32) * 0.1
        b = jax.random.normal(kb, (out_ch,), jnp.float32) * 0.01
        gamma = 1.0 + 0.1 * jax.random.normal(kg, (out_ch,), jnp.float32)
        beta = 0.1 * jax.random.normal(kbt, (out_ch,), jnp.float32)
        params.append(dict(w=w, b=b, gamma=gamma, beta=beta,
                           mean=jnp.zeros((out_ch,), jnp.float32),
                           var=jnp.ones((out_ch,), jnp.float32)))
        last = out_ch
    return params


@functools.partial(jax.jit,
                   static_argnames=("npoint", "radius", "nsample", "group_all"))
def pointnet_set_abstraction(xyz, points, params, *, npoint, radius, nsample,
                             group_all=False, eps=1e-5):
    """
    xyz:    [B, N, 3]
    points: [B, D, N] or None
    returns new_xyz [B, 3, S], new_points [B, Cout, S]
    """
    if points is not None:
        points = jnp.transpose(points, (0, 2, 1))  # [B, N, D]

    if group_all:
        new_xyz, new_points = sample_and_group_all(xyz, points)
    else:
        new_xyz, new_points = sample_and_group(npoint, radius, nsample, xyz, points)
    # new_xyz: [B, S, 3]; new_points: [B, S, K, 3+D]

    # Fold eval-mode BatchNorm (+ conv bias) into the weights and a per-channel shift:
    #   y = (x@w + b - mean) * scale + beta  ==  x@(w*scale) + ((b - mean)*scale + beta)
    weights, shifts = [], []
    for p in params:
        scale = p["gamma"] / jnp.sqrt(p["var"] + eps)                        # (Cout,)
        weights.append((p["w"] * scale[None, :]).astype(jnp.bfloat16))
        shifts.append((((p["b"] - p["mean"]) * scale) + p["beta"])[None, :]
                      .astype(jnp.float32))

    new_points_out = mlp_max_pallas(new_points, weights, shifts)  # [B, Cout, S]
    new_xyz_out = jnp.transpose(new_xyz, (0, 2, 1))               # [B, 3, S]
    return new_xyz_out, new_points_out


if __name__ == "__main__":
    key = jax.random.PRNGKey(0)
    B, N, D = 2, 16, 4
    npoint, nsample, radius = 8, 8, 1.0
    mlp = [16, 32]
    in_channel = 3 + D

    k_xyz, k_pts, k_par = jax.random.split(key, 3)
    xyz = jax.random.normal(k_xyz, (B, N, 3), jnp.float32)      # [B, N, 3]
    points = jax.random.normal(k_pts, (B, D, N), jnp.float32)   # [B, D, N] (torch NCW)
    params = init_params(k_par, in_channel, mlp)

    new_xyz, new_points = pointnet_set_abstraction(
        xyz, points, params, npoint=npoint, radius=radius, nsample=nsample)
    jax.block_until_ready((new_xyz, new_points))

    assert new_xyz.shape == (B, 3, npoint)
    assert new_points.shape == (B, mlp[-1], npoint)
    assert bool(jnp.all(jnp.isfinite(new_points)))
    print("KERNEL_OK")
</pallas_src>

<mosaic_0001>
module attributes {stable_mosaic.version = 11 : i64} {
  func.func @kernel(%arg0: i32, %arg1: i32, %arg2: memref<1x64x7xbf16, #tpu.memory_space<vmem>>, %arg3: memref<7x16xbf16, #tpu.memory_space<vmem>>, %arg4: memref<1x16xf32, #tpu.memory_space<vmem>>, %arg5: memref<16x32xbf16, #tpu.memory_space<vmem>>, %arg6: memref<1x32xf32, #tpu.memory_space<vmem>>, %arg7: memref<1x32x8xf32, #tpu.memory_space<vmem>>) attributes {dimension_semantics = [#tpu.dimension_semantics<parallel>, #tpu.dimension_semantics<parallel>], iteration_bounds = array<i64: 2, 1>, scalar_prefetch = 0 : i64, scratch_operands = 0 : i64, tpu.core_type = #tpu.core_type<tc>, window_params = [{transform_indices = @transform_0, window_bounds = array<i64: 1, 64, 7>}, {pipeline_mode = #tpu.pipeline_mode<synchronous>, transform_indices = @transform_1, window_bounds = array<i64: 7, 16>}, {pipeline_mode = #tpu.pipeline_mode<synchronous>, transform_indices = @transform_2, window_bounds = array<i64: 1, 16>}, {pipeline_mode = #tpu.pipeline_mode<synchronous>, transform_indices = @transform_3, window_bounds = array<i64: 16, 32>}, {pipeline_mode = #tpu.pipeline_mode<synchronous>, transform_indices = @transform_4, window_bounds = array<i64: 1, 32>}, {transform_indices = @transform_5, window_bounds = array<i64: 1, 32, 8>}]} {
    %c0 = arith.constant 0 : index
    %c0_0 = arith.constant 0 : index
    %c0_1 = arith.constant 0 : index
    %0 = vector.load %arg2[%c0, %c0_0, %c0_1] : memref<1x64x7xbf16, #tpu.memory_space<vmem>>, vector<1x64x7xbf16>
    %1 = vector.shape_cast %0 : vector<1x64x7xbf16> to vector<64x7xbf16>
    %c0_2 = arith.constant 0 : index
    %c0_3 = arith.constant 0 : index
    %2 = vector.load %arg3[%c0_2, %c0_3] : memref<7x16xbf16, #tpu.memory_space<vmem>>, vector<7x16xbf16>
    %c0_4 = arith.constant 0 : index
    %c0_5 = arith.constant 0 : index
    %3 = vector.load %arg4[%c0_4, %c0_5] : memref<1x16xf32, #tpu.memory_space<vmem>>, vector<1x16xf32>
    %cst = arith.constant dense<0.000000e+00> : vector<64x16xf32>
    %4 = tpu.matmul %1, %2, %cst {dimension_numbers = #tpu.dot_dimension_numbers<[1], [0], [0], [1], [0, 0, 1, 1], [], []>} : vector<64x7xbf16>, vector<7x16xbf16>, vector<64x16xf32> -> vector<64x16xf32>
    %5 = vector.broadcast %3 : vector<1x16xf32> to vector<64x16xf32>
    %6 = arith.addf %4, %5 : vector<64x16xf32>
    %cst_6 = arith.constant 0.000000e+00 : f32
    %7 = vector.broadcast %cst_6 : f32 to vector<64x16xf32>
    %8 = arith.maximumf %6, %7 : vector<64x16xf32>
    %9 = arith.truncf %8 : vector<64x16xf32> to vector<64x16xbf16>
    %c0_7 = arith.constant 0 : index
    %c0_8 = arith.constant 0 : index
    %10 = vector.load %arg5[%c0_7, %c0_8] : memref<16x32xbf16, #tpu.memory_space<vmem>>, vector<16x32xbf16>
    %c0_9 = arith.constant 0 : index
    %c0_10 = arith.constant 0 : index
    %11 = vector.load %arg6[%c0_9, %c0_10] : memref<1x32xf32, #tpu.memory_space<vmem>>, vector<1x32xf32>
    %cst_11 = arith.constant dense<0.000000e+00> : vector<64x32xf32>
    %12 = tpu.matmul %9, %10, %cst_11 {dimension_numbers = #tpu.dot_dimension_numbers<[1], [0], [0], [1], [0, 0, 1, 1], [], []>} : vector<64x16xbf16>, vector<16x32xbf16>, vector<64x32xf32> -> vector<64x32xf32>
    %13 = vector.broadcast %11 : vector<1x32xf32> to vector<64x32xf32>
    %14 = arith.addf %12, %13 : vector<64x32xf32>
    %cst_12 = arith.constant 0.000000e+00 : f32
    %15 = vector.broadcast %cst_12 : f32 to vector<64x32xf32>
    %16 = arith.maximumf %14, %15 : vector<64x32xf32>
    %17 = vector.shape_cast %16 : vector<64x32xf32> to vector<8x8x32xf32>
    %cst_13 = arith.constant dense<0xFF800000> : vector<8x32xf32>
    %18 = vector.multi_reduction <maximumf>, %17, %cst_13 [1] : vector<8x8x32xf32> to vector<8x32xf32>
    %19 = tpu.transpose %18, [1, 0] : vector<8x32xf32> -> vector<32x8xf32>
    %c0_14 = arith.constant 0 : index
    %c0_15 = arith.constant 0 : index
    %c0_16 = arith.constant 0 : index
    %20 = vector.load %arg7[%c0_14, %c0_15, %c0_16] : memref<1x32x8xf32, #tpu.memory_space<vmem>>, vector<1x32x8xf32>
    %21 = vector.shape_cast %20 : vector<1x32x8xf32> to vector<32x8xf32>
    %22 = vector.shape_cast %19 : vector<32x8xf32> to vector<1x32x8xf32>
    tpu.vector_store %arg7[%c0_14, %c0_15, %c0_16], %22 {strides = array<i32>} : memref<1x32x8xf32, #tpu.memory_space<vmem>>, vector<1x32x8xf32>,
    return
  }
  func.func @transform_0(%arg0: i32, %arg1: i32) -> (i32, i32, i32) {
    %c0_i32 = arith.constant 0 : i32
    %c0_i32_0 = arith.constant 0 : i32
    return %arg0, %arg1, %c0_i32 : i32, i32, i32
  }
  func.func @transform_1(%arg0: i32, %arg1: i32) -> (i32, i32) {
    %c0_i32 = arith.constant 0 : i32
    %c0_i32_0 = arith.constant 0 : i32
    %c0_i32_1 = arith.constant 0 : i32
    return %c0_i32, %c0_i32_0 : i32, i32
  }
  func.func @transform_2(%arg0: i32, %arg1: i32) -> (i32, i32) {
    %c0_i32 = arith.constant 0 : i32
    %c0_i32_0 = arith.constant 0 : i32
    %c0_i32_1 = arith.constant 0 : i32
    return %c0_i32, %c0_i32_0 : i32, i32
  }
  func.func @transform_3(%arg0: i32, %arg1: i32) -> (i32, i32) {
    %c0_i32 = arith.constant 0 : i32
    %c0_i32_0 = arith.constant 0 : i32
    %c0_i32_1 = arith.constant 0 : i32
    return %c0_i32, %c0_i32_0 : i32, i32
  }
  func.func @transform_4(%arg0: i32, %arg1: i32) -> (i32, i32) {
    %c0_i32 = arith.constant 0 : i32
    %c0_i32_0 = arith.constant 0 : i32
    %c0_i32_1 = arith.constant 0 : i32
    return %c0_i32, %c0_i32_0 : i32, i32
  }
  func.func @transform_5(%arg0: i32, %arg1: i32) -> (i32, i32, i32) {
    %c0_i32 = arith.constant 0 : i32
    %c0_i32_0 = arith.constant 0 : i32
    return %arg0, %c0_i32, %arg1 : i32, i32, i32
  }
}

</mosaic_0001>

<llo_original>
// kernel: custom-call.8
$region0: #{custom-call.8}
  %s0 = inlined_call_operand.vmem [shape: f32[2,16], index: 0, kind: output, shape index: {}]

// kernel: pointnet_set_abstraction.1
$region0: #{pointnet_set_abstraction.1}
  #allocation0 [shape = 'u32[]', space=smem, size = 0x4, offset = 0x4, fixed_abs, tag = 'smem constant byte address 0x4 - core index']
  #allocation1 [shape = 'u32[144,128]{1,0:T(1,128)}', space=vmem, size = 0x12000, scoped, tag = 'internal scratch']
  %s0 = inlined_call_operand.vmem [shape: bf16[2,64,7], index: 0, kind: input, shape index: {}]
  %s1 = inlined_call_operand.vmem [shape: bf16[7,16], index: 1, kind: input, shape index: {}]
  %s2 = inlined_call_operand.vmem [shape: f32[1,16], index: 2, kind: input, shape index: {}]
  %s3 = inlined_call_operand.vmem [shape: bf16[16,32], index: 3, kind: input, shape index: {}]
  %s4 = inlined_call_operand.vmem [shape: f32[1,32], index: 4, kind: input, shape index: {}]
  %s5 = inlined_call_operand.vmem [shape: f32[2,32,8], index: 5, kind: output, shape index: {}]
  %s6 = sld [smem:[#allocation0]]
  $region53: #{pointnet_set_abstraction.1} parent=0
    _
  %s8 = ssub.s32 1, %s6
  %s9 = scalar_select 0, %s8, %s6
  loop: start=0, step=1, limit=4
  $region2: #{pointnet_set_abstraction.1} parent=0 // loop_pre_header
    _
  $region3: #{pointnet_set_abstraction.1} parent=0 // loop_header
    %s11 = sphi 0, %s15
    %p12 = scmp.ge.s32.totalorder %s11, 4
    %s18 = sphi 0, %s30
    %s19 = sphi 0, %s26
    %s20 = sphi 0, %s18
    %s21 = sphi 0, %s19
    %s22 = sphi 0, %s20
    %s23 = sphi 0, %s21
    %s35 = sphi 0, %s37
    %s38 = sphi 0, %s35
    %s39 = sphi 0, %s38
    %s55 = sphi 0, %s39
    %s59 = sphi 0, %s59
    %s61 = sphi 0, %s59
    %s62 = sphi 0, %s61
    %s76 = sphi 0, %s62
    %s80 = sphi 0, %s80
    %s82 = sphi 0, %s80
    %s83 = sphi 0, %s82
    %s97 = sphi 0, %s83
    %s101 = sphi 0, %s101
    %s103 = sphi 0, %s101
    %s104 = sphi 0, %s103
    %s118 = sphi 0, %s104
    %s122 = sphi 0, %s122
    %s124 = sphi 0, %s122
    %s125 = sphi 0, %s124
    %s139 = sphi 0, %s125
    %s147 = sphi 0, %s149
    %s150 = sphi 0, %s147
    %s151 = sphi 0, %s150
    %s167 = sphi 0, %s151
  $region4: #{pointnet_set_abstraction.1} parent=0 // loop_header_branch
    %14 = sbr.rel (%p12) target = $region8
  $region5: #{pointnet_set_abstraction.1} parent=0 // loop_body
    %s16 = ssub.s32 %s11, 1
    %s17 = ssub.s32 %s11, 2
    %s24 = sadd.s32 1, %s19
    %p25 = scmp.ge.s32.totalorder %s24, 1
    %s26 = scalar_select %p25, 0, %s24
    %s27 = sadd.s32 1, %s18
    %s28 = scalar_select %p25, %s27, %s18
    %p29 = scmp.ge.s32.totalorder %s28, 2
    %s30 = scalar_select %p29, 0, %s28
    %s31 = ssub.s32 %s18, %s30
    %s32 = ssub.s32 %s19, %s26
    %s33 = sor.u32 %s31, %s32
    %p34 = scmp.eq.s32.totalorder %s33, 0
    %s36 = sadd.s32 %s35, 1
    %s37 = scalar_select %p34, %s35, %s36
    %p40 = pneg %p34
    %p41 = scmp.eq.s32.totalorder %s11, 1
    %p42 = por %p40, %p41
    %p43 = scmp.ne.s32.totalorder %s35, %s38
    %p44 = scmp.eq.s32.totalorder %s11, 0
    %p45 = por %p43, %p44
    %p46 = scmp.ne.s32.totalorder %s35, %s38
    %p47 = scmp.eq.s32.totalorder %s16, 1
    %p48 = por %p46, %p47
    %p49 = scmp.ne.s32.totalorder %s38, %s39
    %p50 = scmp.eq.s32.totalorder %s16, 0
    %p51 = por %p49, %p50
    %p52 = scmp.ne.s32.totalorder %s38, %s39
    %p53 = scmp.eq.s32.totalorder %s17, 1
    %p54 = por %p52, %p53
    %p56 = scmp.ne.s32.totalorder %s39, %s55
    %p57 = scmp.eq.s32.totalorder %s17, 0
    %p58 = por %p56, %p57
    %s60 = sadd.s32 %s59, 1
    %p63 = scmp.eq.s32.totalorder %s11, 1
    %p64 = scmp.ne.s32.totalorder %s59, %s61
    %p65 = scmp.eq.s32.totalorder %s11, 0
    %p66 = por %p64, %p65
    %p67 = scmp.ne.s32.totalorder %s59, %s61
    %p68 = scmp.eq.s32.totalorder %s16, 1
    %p69 = por %p67, %p68
    %p70 = scmp.ne.s32.totalorder %s61, %s62
    %p71 = scmp.eq.s32.totalorder %s16, 0
    %p72 = por %p70, %p71
    %p73 = scmp.ne.s32.totalorder %s61, %s62
    %p74 = scmp.eq.s32.totalorder %s17, 1
    %p75 = por %p73, %p74
    %p77 = scmp.ne.s32.totalorder %s62, %s76
    %p78 = scmp.eq.s32.totalorder %s17, 0
    %p79 = por %p77, %p78
    %s81 = sadd.s32 %s80, 1
    %p84 = scmp.eq.s32.totalorder %s11, 1
    %p85 = scmp.ne.s32.totalorder %s80, %s82
    %p86 = scmp.eq.s32.totalorder %s11, 0
    %p87 = por %p85, %p86
    %p88 = scmp.ne.s32.totalorder %s80, %s82
    %p89 = scmp.eq.s32.totalorder %s16, 1
    %p90 = por %p88, %p89
    %p91 = scmp.ne.s32.totalorder %s82, %s83
    %p92 = scmp.eq.s32.totalorder %s16, 0
    %p93 = por %p91, %p92
    %p94 = scmp.ne.s32.totalorder %s82, %s83
    %p95 = scmp.eq.s32.totalorder %s17, 1
    %p96 = por %p94, %p95
    %p98 = scmp.ne.s32.totalorder %s83, %s97
    %p99 = scmp.eq.s32.totalorder %s17, 0
    %p100 = por %p98, %p99
    %s102 = sadd.s32 %s101, 1
    %p105 = scmp.eq.s32.totalorder %s11, 1
    %p106 = scmp.ne.s32.totalorder %s101, %s103
    %p107 = scmp.eq.s32.totalorder %s11, 0
    %p108 = por %p106, %p107
    %p109 = scmp.ne.s32.totalorder %s101, %s103
    %p110 = scmp.eq.s32.totalorder %s16, 1
    %p111 = por %p109, %p110
    %p112 = scmp.ne.s32.totalorder %s103, %s104
    %p113 = scmp.eq.s32.totalorder %s16, 0
    %p114 = por %p112, %p113
    %p115 = scmp.ne.s32.totalorder %s103, %s104
    %p116 = scmp.eq.s32.totalorder %s17, 1
    %p117 = por %p115, %p116
    %p119 = scmp.ne.s32.totalorder %s104, %s118
    %p120 = scmp.eq.s32.totalorder %s17, 0
    %p121 = por %p119, %p120
    %s123 = sadd.s32 %s122, 1
    %p126 = scmp.eq.s32.totalorder %s11, 1
    %p127 = scmp.ne.s32.totalorder %s122, %s124
    %p128 = scmp.eq.s32.totalorder %s11, 0
    %p129 = por %p127, %p128
    %p130 = scmp.ne.s32.totalorder %s122, %s124
    %p131 = scmp.eq.s32.totalorder %s16, 1
    %p132 = por %p130, %p131
    %p133 = scmp.ne.s32.totalorder %s124, %s125
    %p134 = scmp.eq.s32.totalorder %s16, 0
    %p135 = por %p133, %p134
    %p136 = scmp.ne.s32.totalorder %s124, %s125
    %p137 = scmp.eq.s32.totalorder %s17, 1
    %p138 = por %p136, %p137
    %p140 = scmp.ne.s32.totalorder %s125, %s139
    %p141 = scmp.eq.s32.totalorder %s17, 0
    %p142 = por %p140, %p141
    %s143 = ssub.s32 %s18, %s30
    %s144 = ssub.s32 %s19, %s26
    %s145 = sor.u32 %s143, %s144
    %p146 = scmp.eq.s32.totalorder %s145, 0
    %s148 = sadd.s32 %s147, 1
    %s149 = scalar_select %p146, %s147, %s148
    %p152 = pneg %p146
    %p153 = scmp.eq.s32.totalorder %s11, 1
    %p154 = por %p152, %p153
    %p155 = scmp.ne.s32.totalorder %s147, %s150
    %p156 = scmp.eq.s32.totalorder %s11, 0
    %p157 = por %p155, %p156
    %p158 = scmp.ne.s32.totalorder %s147, %s150
    %p159 = scmp.eq.s32.totalorder %s16, 1
    %p160 = por %p158, %p159
    %p161 = scmp.ne.s32.totalorder %s150, %s151
    %p162 = scmp.eq.s32.totalorder %s16, 0
    %p163 = por %p161, %p162
    %p164 = scmp.ne.s32.totalorder %s150, %s151
    %p165 = scmp.eq.s32.totalorder %s17, 1
    %p166 = por %p164, %p165
    %p168 = scmp.ne.s32.totalorder %s151, %s167
    %p169 = scmp.eq.s32.totalorder %s17, 0
    %p170 = por %p168, %p169
    %p171 = scmp.le.s32.totalorder 1, %s11
    %p172 = scmp.lt.s32.totalorder %s11, 3
    %p173 = pnand %p171, %p172
    %p174 = pneg %p173
    // Predicated region
    $region9: #{pointnet_set_abstraction.1} parent=5 // pred_check
      _
    $region10: #{pointnet_set_abstraction.1} parent=5 // pred_check_branch
      %176 = sbr.rel (%p173) target = $region12
    $region11: #{pointnet_set_abstraction.1} parent=5 // pred_region
      %s177 = ssub.s32 %s11, 1
      // Predicated region
      $region13: #{pointnet_set_abstraction.1} parent=11 // pred_check
        %p178 = pneg %p72
      $region14: #{pointnet_set_abstraction.1} parent=11 // pred_check_branch
        %180 = sbr.rel (%p178) target = $region16
      $region15: #{pointnet_set_abstraction.1} parent=11 // pred_region
        _
      $region16: #{pointnet_set_abstraction.1} parent=11 // pred_fallthru
        _
      // Predicated region
      $region17: #{pointnet_set_abstraction.1} parent=11 // pred_check
        %p181 = pneg %p93
      $region18: #{pointnet_set_abstraction.1} parent=11 // pred_check_branch
        %183 = sbr.rel (%p181) target = $region20
      $region19: #{pointnet_set_abstraction.1} parent=11 // pred_region
        _
      $region20: #{pointnet_set_abstraction.1} parent=11 // pred_fallthru
        _
      // Predicated region
      $region21: #{pointnet_set_abstraction.1} parent=11 // pred_check
        %p184 = pneg %p114
      $region22: #{pointnet_set_abstraction.1} parent=11 // pred_check_branch
        %186 = sbr.rel (%p184) target = $region24
      $region23: #{pointnet_set_abstraction.1} parent=11 // pred_region
        _
      $region24: #{pointnet_set_abstraction.1} parent=11 // pred_fallthru
        _
      // Predicated region
      $region25: #{pointnet_set_abstraction.1} parent=11 // pred_check
        %p187 = pneg %p135
      $region26: #{pointnet_set_abstraction.1} parent=11 // pred_check_branch
        %189 = sbr.rel (%p187) target = $region28
      $region27: #{pointnet_set_abstraction.1} parent=11 // pred_region
        _
      $region28: #{pointnet_set_abstraction.1} parent=11 // pred_fallthru
        _
    $region12: #{pointnet_set_abstraction.1} parent=5 // pred_fallthru
      _
    %p190 = scmp.lt.s32.totalorder %s11, 2
    // Predicated region
    $region29: #{pointnet_set_abstraction.1} parent=5 // pred_check
      %p191 = pneg %p190
    $region30: #{pointnet_set_abstraction.1} parent=5 // pred_check_branch
      %193 = sbr.rel (%p191) target = $region32
    $region31: #{pointnet_set_abstraction.1} parent=5 // pred_region
      // Predicated region
      $region33: #{pointnet_set_abstraction.1} parent=31 // pred_check
        %p194 = pneg %p45
      $region34: #{pointnet_set_abstraction.1} parent=31 // pred_check_branch
        %196 = sbr.rel (%p194) target = $region36
      $region35: #{pointnet_set_abstraction.1} parent=31 // pred_region
        %s197 = smul.u32 8, %s19
        %p198 = scmp.lt.s32.totalorder %s18, 1
        %s199 = scalar_select %p198, %s18, 1
        %p200 = scmp.lt.s32.totalorder %s197, 7
        %s201 = scalar_select %p200, %s197, 7
        %s202 = smul.addr %s199, 8
        %s203 = sadd.s32 %s201, %s202
        %s204 = smul.addr %s203, 4
        %s205 = scalar_lea.vmem %s0, %s204
        %s206 = smul.u32 8, %s19
      $region36: #{pointnet_set_abstraction.1} parent=31 // pred_fallthru
        _
    $region32: #{pointnet_set_abstraction.1} parent=5 // pred_fallthru
      _
    %p207 = scmp.le.s32.totalorder 1, %s11
    %p208 = scmp.lt.s32.totalorder %s11, 3
    %p209 = pnand %p207, %p208
    %p210 = pneg %p209
    // Predicated region
    $region37: #{pointnet_set_abstraction.1} parent=5 // pred_check
      _
    $region38: #{pointnet_set_abstraction.1} parent=5 // pred_check_branch
      %212 = sbr.rel (%p209) target = $region40
    $region39: #{pointnet_set_abstraction.1} parent=5 // pred_region
      %s213 = ssub.s32 %s11, 1
      %s214 = smul.u32 8, %s21
      %p215 = scmp.lt.s32.totalorder %s20, 1
      %s216 = scalar_select %p215, %s20, 1
      %p217 = scmp.lt.s32.totalorder %s214, 7
      %s218 = scalar_select %p217, %s214, 7
      %s219 = smul.addr %s216, 8
      %s220 = sadd.s32 %s218, %s219
      %s221 = smul.addr %s220, 4
      %s222 = scalar_lea.vmem %s0, %s221
      %p223 = pneg %p51
      %p224 = pneg %p48
      %p225 = pneg %p72
      %p226 = pneg %p69
      %p227 = pneg %p93
      %p228 = pneg %p90
      %p229 = pneg %p114
      %p230 = pneg %p111
      %p231 = pneg %p135
      %p232 = pneg %p132
      %p233 = pneg %p163
      %p234 = pneg %p160
      %p235 = scmp.lt.s32.totalorder %s20, 1
      %s236 = scalar_select %p235, %s20, 1
      %p237 = scmp.lt.s32.totalorder %s21, 0
      %s238 = scalar_select %p237, %s21, 0
      %s239 = smul.addr %s236, 4
      %s240 = sadd.s32 %s238, %s239
      %s241 = smul.addr %s240, 8
      %s242 = scalar_lea.vmem %s5, %s241
      %s243 = smul.u32 8, %s21
      %p244 = scmp.lt.s32.totalorder %s20, 1
      %s245 = scalar_select %p244, %s20, 1
      %p246 = scmp.lt.s32.totalorder %s243, 7
      %s247 = scalar_select %p246, %s243, 7
      %s248 = smul.addr %s245, 8
      %s249 = sadd.s32 %s247, %s248
      %s250 = smul.addr %s249, 4
      %s251 = scalar_lea.vmem %s0, %s250
      %s252 = smul.u32 8, %s21
      %p253 = scmp.lt.s32.totalorder %s20, 1
      %s254 = scalar_select %p253, %s20, 1
      %p255 = scmp.lt.s32.totalorder %s21, 0
      %s256 = scalar_select %p255, %s21, 0
      %s257 = smul.addr %s254, 4
      %s258 = sadd.s32 %s256, %s257
      %s259 = smul.addr %s258, 8
      %s260 = scalar_lea.vmem %s5, %s259
      %v262 = vld [vmem:[%s251] sm:$0xf]
      %v263 = vld [vmem:[%s251 + $0x4] sm:$0xf]
      %v264 = vld [vmem:[%s251 + $0x8] sm:$0xf]
      %v265 = vld [vmem:[%s251 + $0xc] sm:$0xf]
      %v266 = vld [vmem:[%s251 + $0x10] sm:$0xf]
      %v267 = vld [vmem:[%s251 + $0x14] sm:$0xf]
      %v268 = vld [vmem:[%s251 + $0x18] sm:$0xf]
      %v269 = vld [vmem:[%s251 + $0x1c] sm:$0xf]
      %v270 = vld [vmem:[%s1] sm:$0xf]
      %v271 = vld [vmem:[%s2] sm:$0x1]
      %v273 = vlaneseq
      %v274 = vshrl.u32 %v273, 7
      %v275 = vsub.s32 0, %v274
      %v276 = vrot.slane %v271, %v275
      %v286 = vunpack.c.l.b16 %v262
      %v287 = vunpack.c.l.b16 %v263
      %v288 = vunpack.c.l.b16 %v264
      %v289 = vunpack.c.l.b16 %v265
      %v290 = vunpack.c.l.b16 %v266
      %v291 = vunpack.c.l.b16 %v267
      %v292 = vunpack.c.l.b16 %v268
      %v293 = vunpack.c.l.b16 %v269
      %v294 = vpack.c.b16 %v287, %v286
      %v295 = vpack.c.b16 %v289, %v288
      %v296 = vpack.c.b16 %v291, %v290
      %v297 = vpack.c.b16 %v293, %v292
      %vm298 = vcmask 56320
      %v300 = vsel %vm298, %v294, 0
      %v303 = vsel %vm298, %v295, 0
      %v306 = vsel %vm298, %v296, 0
      %v309 = vsel %vm298, %v297, 0
      %vm311 = vcmask 1042432
      %vm312 = vcmask 1043456
      %v313 = vsel %vm311, 4294967295, 65535
      %v314 = vsel %vm312, %v313, 0
      %v316 = vand.u32 %v270, %v314
      %318 = vmatprep.subr.bf16.mxu0 0
      %319 = vmatpush1.bf16.msra.mxu0 %v316
      %320 = vmatprep.subr.bf16.mxu0 0
      %321 = vmatpush1.bf16.msra.mxu0 0
      %322 = vmatprep.subr.bf16.mxu0 0
      %323 = vmatpush1.bf16.msra.mxu0 0
      %324 = vmatprep.subr.bf16.mxu0 0
      %325 = vmatpush1.bf16.msra.mxu0 0
      %326 = vmatprep.subr.bf16.mxu0 0
      %327 = vmatpush1.bf16.msra.mxu0 0
      %328 = vmatprep.subr.bf16.mxu0 0
      %329 = vmatpush1.bf16.msra.mxu0 0
      %330 = vmatprep.subr.bf16.mxu0 0
      %331 = vmatpush1.bf16.msra.mxu0 0
      %332 = vmatprep.subr.bf16.mxu0 0
      %333 = vmatpush1.bf16.msra.mxu0 0
      %334 = vmatprep.subr.bf16.mxu0 0
      %335 = vmatpush1.bf16.msra.mxu0 0
      %336 = vmatprep.subr.bf16.mxu0 0
      %337 = vmatpush1.bf16.msra.mxu0 0
      %338 = vmatprep.subr.bf16.mxu0 0
      %339 = vmatpush1.bf16.msra.mxu0 0
      %340 = vmatprep.subr.bf16.mxu0 0
      %341 = vmatpush1.bf16.msra.mxu0 0
      %342 = vmatprep.subr.bf16.mxu0 0
      %343 = vmatpush1.bf16.msra.mxu0 0
      %344 = vmatprep.subr.bf16.mxu0 0
      %345 = vmatpush1.bf16.msra.mxu0 0
      %346 = vmatprep.subr.bf16.mxu0 0
      %347 = vmatpush1.bf16.msra.mxu0 0
      %348 = vmatprep.subr.bf16.mxu0 0
      %349 = vmatpush1.bf16.msra.mxu0 0
      %350 = vmatprep.mubr.bf16.mxu0 0
      %351 = vmatmul.mubr.bf16.gmra.mrb[0].mxu0 %v300
      %v352 = vpop.f32.mrb[0].mxu0
      %v353 = vadd.f32 %v276, %v352
      %v354 = vpop.f32.mrb[0].mxu0
      %v355 = vpop.f32.mrb[0].mxu0
      %v356 = vadd.f32 %v276, %v355
      %v357 = vpop.f32.mrb[0].mxu0
      %358 = vmatprep.mubr.bf16.mxu0 0
      %359 = vmatmul.mubr.bf16.gmra.mrb[0].mxu0 %v303
      %v360 = vpop.f32.mrb[0].mxu0
      %v361 = vadd.f32 %v276, %v360
      %v362 = vpop.f32.mrb[0].mxu0
      %v363 = vpop.f32.mrb[0].mxu0
      %v364 = vadd.f32 %v276, %v363
      %v365 = vpop.f32.mrb[0].mxu0
      %366 = vmatprep.mubr.bf16.mxu0 0
      %367 = vmatmul.mubr.bf16.gmra.mrb[0].mxu0 %v306
      %v368 = vpop.f32.mrb[0].mxu0
      %v369 = vadd.f32 %v276, %v368
      %v370 = vpop.f32.mrb[0].mxu0
      %v371 = vpop.f32.mrb[0].mxu0
      %v372 = vadd.f32 %v276, %v371
      %v373 = vpop.f32.mrb[0].mxu0
      %374 = vmatprep.mubr.bf16.mxu0 0
      %375 = vmatmul.mubr.bf16.gmra.mrb[0].mxu0 %v309
      %v376 = vpop.f32.mrb[0].mxu0
      %v377 = vadd.f32 %v276, %v376
      %v378 = vpop.f32.mrb[0].mxu0
      %v379 = vpop.f32.mrb[0].mxu0
      %v380 = vadd.f32 %v276, %v379
      %v381 = vpop.f32.mrb[0].mxu0
      %382 = vdwg.mxu0
      %v383 = vmax.f32 %v353, 0.0
      %v384 = vmax.f32 %v356, 0.0
      %v385 = vmax.f32 %v361, 0.0
      %v386 = vmax.f32 %v364, 0.0
      %v387 = vmax.f32 %v369, 0.0
      %v388 = vmax.f32 %v372, 0.0
      %v389 = vmax.f32 %v377, 0.0
      %v390 = vmax.f32 %v380, 0.0
      %v391 = vpack.c.bf16 %v384, %v383
      %v392 = vpack.c.bf16 %v386, %v385
      %v393 = vpack.c.bf16 %v388, %v387
      %v394 = vpack.c.bf16 %v390, %v389
      %v395 = vld [vmem:[%s3] sm:$0xf]
      %v396 = vld [vmem:[%s3 + $0x4] sm:$0xf]
      %v397 = vld [vmem:[%s4] sm:$0x1]
      %v399 = vlaneseq
      %v400 = vshrl.u32 %v399, 7
      %v401 = vsub.s32 0, %v400
      %v402 = vrot.slane %v397, %v401
      %v406 = vunpack.c.l.b16 %v395
      %v407 = vunpack.c.l.b16 %v396
      %v408 = vpack.c.b16 %v407, %v406
      %vm410 = vcmask 130048
      %v412 = vsel %vm410, %v391, 0
      %v415 = vsel %vm410, %v392, 0
      %v418 = vsel %vm410, %v393, 0
      %v421 = vsel %vm410, %v394, 0
      %423 = vmatprep.subr.bf16.mxu0 0
      %424 = vmatpush1.bf16.msra.mxu0 %v408
      %425 = vmatprep.subr.bf16.mxu0 0
      %426 = vmatpush1.bf16.msra.mxu0 0
      %427 = vmatprep.subr.bf16.mxu0 0
      %428 = vmatpush1.bf16.msra.mxu0 0
      %429 = vmatprep.subr.bf16.mxu0 0
      %430 = vmatpush1.bf16.msra.mxu0 0
      %431 = vmatprep.subr.bf16.mxu0 0
      %432 = vmatpush1.bf16.msra.mxu0 0
      %433 = vmatprep.subr.bf16.mxu0 0
      %434 = vmatpush1.bf16.msra.mxu0 0
      %435 = vmatprep.subr.bf16.mxu0 0
      %436 = vmatpush1.bf16.msra.mxu0 0
      %437 = vmatprep.subr.bf16.mxu0 0
      %438 = vmatpush1.bf16.msra.mxu0 0
      %439 = vmatprep.subr.bf16.mxu0 0
      %440 = vmatpush1.bf16.msra.mxu0 0
      %441 = vmatprep.subr.bf16.mxu0 0
      %442 = vmatpush1.bf16.msra.mxu0 0
      %443 = vmatprep.subr.bf16.mxu0 0
      %444 = vmatpush1.bf16.msra.mxu0 0
      %445 = vmatprep.subr.bf16.mxu0 0
      %446 = vmatpush1.bf16.msra.mxu0 0
      %447 = vmatprep.subr.bf16.mxu0 0
      %448 = vmatpush1.bf16.msra.mxu0 0
      %449 = vmatprep.subr.bf16.mxu0 0
      %450 = vmatpush1.bf16.msra.mxu0 0
      %451 = vmatprep.subr.bf16.mxu0 0
      %452 = vmatpush1.bf16.msra.mxu0 0
      %453 = vmatprep.subr.bf16.mxu0 0
      %454 = vmatpush1.bf16.msra.mxu0 0
      %455 = vmatprep.mubr.bf16.mxu0 0
      %456 = vmatmul.mubr.bf16.gmra.mrb[0].mxu0 %v412
      %v457 = vpop.f32.mrb[0].mxu0
      %v458 = vadd.f32 %v402, %v457
      %v459 = vpop.f32.mrb[0].mxu0
      %v460 = vpop.f32.mrb[0].mxu0
      %v461 = vadd.f32 %v402, %v460
      %v462 = vpop.f32.mrb[0].mxu0
      %463 = vmatprep.mubr.bf16.mxu0 0
      %464 = vmatmul.mubr.bf16.gmra.mrb[0].mxu0 %v415
      %v465 = vpop.f32.mrb[0].mxu0
      %v466 = vadd.f32 %v402, %v465
      %v467 = vpop.f32.mrb[0].mxu0
      %v468 = vpop.f32.mrb[0].mxu0
      %v469 = vadd.f32 %v402, %v468
      %v470 = vpop.f32.mrb[0].mxu0
      %471 = vmatprep.mubr.bf16.mxu0 0
      %472 = vmatmul.mubr.bf16.gmra.mrb[0].mxu0 %v418
      %v473 = vpop.f32.mrb[0].mxu0
      %v474 = vadd.f32 %v402, %v473
      %v475 = vpop.f32.mrb[0].mxu0
      %v476 = vpop.f32.mrb[0].mxu0
      %v477 = vadd.f32 %v402, %v476
      %v478 = vpop.f32.mrb[0].mxu0
      %479 = vmatprep.mubr.bf16.mxu0 0
      %480 = vmatmul.mubr.bf16.gmra.mrb[0].mxu0 %v421
      %v481 = vpop.f32.mrb[0].mxu0
      %v482 = vadd.f32 %v402, %v481
      %v483 = vpop.f32.mrb[0].mxu0
      %v484 = vpop.f32.mrb[0].mxu0
      %v485 = vadd.f32 %v402, %v484
      %v486 = vpop.f32.mrb[0].mxu0
      %487 = vdwg.mxu0
      %v488 = vmax.f32 %v458, 0.0
      %v489 = vmax.f32 %v461, 0.0
      %v490 = vmax.f32 %v466, 0.0
      %v491 = vmax.f32 %v469, 0.0
      %v492 = vmax.f32 %v474, 0.0
      %v493 = vmax.f32 %v477, 0.0
      %v494 = vmax.f32 %v482, 0.0
      %v495 = vmax.f32 %v485, 0.0
      %vm496 = vcmask 261120
      %v497 = vsel %vm496, %v488, -inf
      %v498 = vrot.slane %v497, 4
      %v499 = vmax.f32 %v497, %v498
      %v500 = vrot.slane %v499, 2
      %v501 = vmax.f32 %v499, %v500
      %v502 = vrot.slane %v501, 1
      %v503 = vmax.f32 %v501, %v502
      %v504 = vsel %vm496, %v489, -inf
      %v505 = vrot.slane %v504, 4
      %v506 = vmax.f32 %v504, %v505
      %v507 = vrot.slane %v506, 2
      %v508 = vmax.f32 %v506, %v507
      %v509 = vrot.slane %v508, 1
      %v510 = vmax.f32 %v508, %v509
      %v511 = vsel %vm496, %v490, -inf
      %v512 = vrot.slane %v511, 4
      %v513 = vmax.f32 %v511, %v512
      %v514 = vrot.slane %v513, 2
      %v515 = vmax.f32 %v513, %v514
      %v516 = vrot.slane %v515, 1
      %v517 = vmax.f32 %v515, %v516
      %v518 = vsel %vm496, %v491, -inf
      %v519 = vrot.slane %v518, 4
      %v520 = vmax.f32 %v518, %v519
      %v521 = vrot.slane %v520, 2
      %v522 = vmax.f32 %v520, %v521
      %v523 = vrot.slane %v522, 1
      %v524 = vmax.f32 %v522, %v523
      %v525 = vsel %vm496, %v492, -inf
      %v526 = vrot.slane %v525, 4
      %v527 = vmax.f32 %v525, %v526
      %v528 = vrot.slane %v527, 2
      %v529 = vmax.f32 %v527, %v528
      %v530 = vrot.slane %v529, 1
      %v531 = vmax.f32 %v529, %v530
      %v532 = vsel %vm496, %v493, -inf
      %v533 = vrot.slane %v532, 4
      %v534 = vmax.f32 %v532, %v533
      %v535 = vrot.slane %v534, 2
      %v536 = vmax.f32 %v534, %v535
      %v537 = vrot.slane %v536, 1
      %v538 = vmax.f32 %v536, %v537
      %v539 = vsel %vm496, %v494, -inf
      %v540 = vrot.slane %v539, 4
      %v541 = vmax.f32 %v539, %v540
      %v542 = vrot.slane %v541, 2
      %v543 = vmax.f32 %v541, %v542
      %v544 = vrot.slane %v543, 1
      %v545 = vmax.f32 %v543, %v544
      %v546 = vsel %vm496, %v495, -inf
      %v547 = vrot.slane %v546, 4
      %v548 = vmax.f32 %v546, %v547
      %v549 = vrot.slane %v548, 2
      %v550 = vmax.f32 %v548, %v549
      %v551 = vrot.slane %v550, 1
      %v552 = vmax.f32 %v550, %v551
      %vm561 = vcmask 1041409
      %v562 = vsel %vm561, %v510, %v503
      %vm563 = vcmask 1042434
      %v564 = vsel %vm563, %v517, %v562
      %vm565 = vcmask 1043459
      %v566 = vsel %vm565, %v524, %v564
      %vm567 = vcmask 1044484
      %v568 = vsel %vm567, %v531, %v566
      %vm569 = vcmask 1045509
      %v570 = vsel %vm569, %v538, %v568
      %vm571 = vcmask 1046534
      %v572 = vsel %vm571, %v545, %v570
      %vm573 = vcmask 1047559
      %v574 = vsel %vm573, %v552, %v572
      %576 = vxpose.xlu0.b32.start [1/16] %v574, 128
      %577 = vxpose.xlu0.b32.cont [2/16] 0.0, 128
      %578 = vxpose.xlu0.b32.cont [3/16] 0.0, 128
      %579 = vxpose.xlu0.b32.cont [4/16] 0.0, 128
      %580 = vxpose.xlu0.b32.cont [5/16] 0.0, 128
      %581 = vxpose.xlu0.b32.cont [6/16] 0.0, 128
      %582 = vxpose.xlu0.b32.cont [7/16] 0.0, 128
      %583 = vxpose.xlu0.b32.cont [8/16] 0.0, 128
      %584 = vxpose.xlu0.b32.cont [9/16] 0.0, 128
      %585 = vxpose.xlu0.b32.cont [10/16] 0.0, 128
      %586 = vxpose.xlu0.b32.cont [11/16] 0.0, 128
      %587 = vxpose.xlu0.b32.cont [12/16] 0.0, 128
      %588 = vxpose.xlu0.b32.cont [13/16] 0.0, 128
      %589 = vxpose.xlu0.b32.cont [14/16] 0.0, 128
      %590 = vxpose.xlu0.b32.cont [15/16] 0.0, 128
      %591 = vxpose.xlu0.b32.end [16/16] 0.0, 128
      %v592 = vpop.trf.xlu0
      %v593 = vpop.trf.xlu0
      %v594 = vpop.trf.xlu0
      %v595 = vpop.trf.xlu0
      %v596 = vpop.trf.xlu0
      %v597 = vpop.trf.xlu0
      %v598 = vpop.trf.xlu0
      %v599 = vpop.trf.xlu0
      %v600 = vpop.trf.xlu0
      %v601 = vpop.trf.xlu0
      %v602 = vpop.trf.xlu0
      %v603 = vpop.trf.xlu0
      %v604 = vpop.trf.xlu0
      %v605 = vpop.trf.xlu0
      %v606 = vpop.trf.xlu0
      %v607 = vpop.trf.xlu0
      %vm608 = vcmask 64512
      %609 = vst.msk [vmem:[%s260] sm:$0xff] %vm608, %v592
      %610 = vst.msk [vmem:[%s260 + $0x8] sm:$0xff] %vm608, %v593
      %611 = vst.msk [vmem:[%s260 + $0x10] sm:$0xff] %vm608, %v594
      %612 = vst.msk [vmem:[%s260 + $0x18] sm:$0xff] %vm608, %v595
      %p613 = scmp.lt.s32.totalorder %s20, 1
      %s614 = scalar_select %p613, %s20, 1
      %p615 = scmp.lt.s32.totalorder %s21, 0
      %s616 = scalar_select %p615, %s21, 0
      %s617 = smul.addr %s614, 4
      %s618 = sadd.s32 %s616, %s617
      %s619 = smul.addr %s618, 8
      %s620 = scalar_lea.vmem %s5, %s619
      // Predicated region
      $region41: #{pointnet_set_abstraction.1} parent=39 // pred_check
        %p621 = pneg %p160
      $region42: #{pointnet_set_abstraction.1} parent=39 // pred_check_branch
        %623 = sbr.rel (%p621) target = $region44
      $region43: #{pointnet_set_abstraction.1} parent=39 // pred_region
        _
      $region44: #{pointnet_set_abstraction.1} parent=39 // pred_fallthru
        _
    $region40: #{pointnet_set_abstraction.1} parent=5 // pred_fallthru
      _
    %p624 = scmp.le.s32.totalorder 2, %s11
    // Predicated region
    $region45: #{pointnet_set_abstraction.1} parent=5 // pred_check
      %p625 = pneg %p624
    $region46: #{pointnet_set_abstraction.1} parent=5 // pred_check_branch
      %627 = sbr.rel (%p625) target = $region48
    $region47: #{pointnet_set_abstraction.1} parent=5 // pred_region
      %s628 = ssub.s32 %s11, 2
      // Predicated region
      $region49: #{pointnet_set_abstraction.1} parent=47 // pred_check
        %p629 = pneg %p166
      $region50: #{pointnet_set_abstraction.1} parent=47 // pred_check_branch
        %631 = sbr.rel (%p629) target = $region52
      $region51: #{pointnet_set_abstraction.1} parent=47 // pred_region
        %p632 = scmp.lt.s32.totalorder %s22, 1
        %s633 = scalar_select %p632, %s22, 1
        %p634 = scmp.lt.s32.totalorder %s23, 0
        %s635 = scalar_select %p634, %s23, 0
        %s636 = smul.addr %s633, 4
        %s637 = sadd.s32 %s635, %s636
        %s638 = smul.addr %s637, 8
        %s639 = scalar_lea.vmem %s5, %s638
      $region52: #{pointnet_set_abstraction.1} parent=47 // pred_fallthru
        _
    $region48: #{pointnet_set_abstraction.1} parent=5 // pred_fallthru
      _
  $region6: #{pointnet_set_abstraction.1} parent=0 // loop_footer
    %s15 = sadd.s32 1, %s11
  $region7: #{pointnet_set_abstraction.1} parent=0 // loop_footer_branch
    %10 = sbr.rel target = $region3
  $region8: #{pointnet_set_abstraction.1} parent=0 // loop_exit
    _

</llo_original>
